<compile_context>
chip_gen: v5e
topology: v5e:2x2
jax: 0.10.0
libtpu: 0.0.40
codegen_flags: <defaults>
</compile_context>

<pallas_src>
import jax
import jax.numpy as jnp
from jax import lax
from jax.experimental import pallas as pl
from jax.experimental.pallas import tpu as pltpu

_BN_EPS = 1e-5


# ----------------------------------------------------------------------------
# helpers: tiling / padding
# ----------------------------------------------------------------------------
def _round_up(x, m):
    return ((x + m - 1) // m) * m


def _tile_sizes():
    """Per-generation (TM, TN, TK) tile caps for bf16 operands / f32 accumulation."""
    kind = ""
    try:
        kind = jax.devices()[0].device_kind.lower()
    except Exception:
        pass
    if "v5 lite" in kind or "v5e" in kind or "v5lite" in kind:
        return 512, 128, 512        # v5e: 4x128^2 MXU, small scoped-VMEM default
    if "v7" in kind or "7x" in kind:
        return 512, 256, 512        # v7x: 2x256^2 MXU but only 64 MiB VMEM
    return 1024, 256, 512           # v6e (default): 2x256^2 MXU, 128 MiB VMEM


def _pick_tile(dim, cap, unit=128):
    """Return (tile, padded_dim): padded_dim is a multiple of `unit`, tile divides it."""
    padded = _round_up(dim, unit)
    t = min(cap, padded)
    t = (t // unit) * unit
    while padded % t != 0:
        t -= unit
    return t, padded


def _vmem_limit(tm, tn, tk, krp, has_res, has_rs):
    """Rough VMEM need: double-buffered input tiles + output tile + f32 accumulator."""
    b = 2 * tm * tk * 2 + 2 * tk * tn * 2 + 2 * 2 * tn * 4
    if has_res:
        b += 2 * tm * tn * 4
    if has_rs:
        b += 2 * (tm * krp + krp * tn) * 2 + 2 * 2 * tn * 4
    b += 2 * tm * tn * 4 + tm * tn * 4
    return int(min(b + (16 << 20), 48 << 20))   # headroom; stay under v7x's 64 MiB


# ----------------------------------------------------------------------------
# Pallas kernel: tiled  (A @ W) * scale + bias  [+ residual]  [+ shortcut matmul]  [ReLU]
# ----------------------------------------------------------------------------
def _make_kernel(has_res, has_rs, relu):
    def kernel(*refs):
        it = iter(refs)
        a_ref = next(it)
        w_ref = next(it)
        scale_ref = next(it)
        bias_ref = next(it)
        res_ref = next(it) if has_res else None
        if has_rs:
            rs_a_ref = next(it)
            rs_w_ref = next(it)
            rs_scale_ref = next(it)
            rs_bias_ref = next(it)
        o_ref = next(it)
        acc_ref = next(it)

        k = pl.program_id(2)

        @pl.when(k == 0)
        def _init():
            acc_ref[...] = jnp.zeros_like(acc_ref)

        acc_ref[...] += jnp.dot(a_ref[...], w_ref[...],
                                preferred_element_type=jnp.float32)

        @pl.when(k == pl.num_programs(2) - 1)
        def _epilogue():
            out = acc_ref[...] * scale_ref[...] + bias_ref[...]
            if has_res:
                out = out + res_ref[...].astype(jnp.float32)
            if has_rs:
                sc = jnp.dot(rs_a_ref[...], rs_w_ref[...],
                             preferred_element_type=jnp.float32)
                out = out + sc * rs_scale_ref[...] + rs_bias_ref[...]
            if relu:
                out = jnp.maximum(out, 0.0)
            o_ref[...] = out.astype(o_ref.dtype)

    return kernel


def fused_conv_matmul(a, w, scale, bias, residual=None, residual_mm=None,
                      relu=False, out_dtype=jnp.float32):
    """out = maybe_relu((a @ w)*scale + bias [+ residual] [+ (ra @ rw)*rs + rb]).

    a: [M, K] patches, w: [K, Cout]. Operands are cast to bf16 (f32 accumulate);
    K/Cout are zero-padded to lane multiples and the padding is sliced off here.
    """
    M, K = a.shape
    Cout = w.shape[1]
    TM, TN, TK = _tile_sizes()

    tn, Np = _pick_tile(Cout, TN)
    tk, Kp = _pick_tile(K, TK)
    tm = min(TM, _round_up(M, 8))
    Mp = _round_up(M, tm)

    a_p = jnp.pad(a.astype(jnp.bfloat16), ((0, Mp - M), (0, Kp - K)))
    w_p = jnp.pad(w.astype(jnp.bfloat16), ((0, Kp - K), (0, Np - Cout)))
    scale_p = jnp.pad(scale.astype(jnp.float32).reshape(1, Cout), ((0, 0), (0, Np - Cout)))
    bias_p = jnp.pad(bias.astype(jnp.float32).reshape(1, Cout), ((0, 0), (0, Np - Cout)))

    args = [a_p, w_p, scale_p, bias_p]
    in_specs = [
        pl.BlockSpec((tm, tk), lambda i, j, k: (i, k)),
        pl.BlockSpec((tk, tn), lambda i, j, k: (k, j)),
        # per-channel vectors: same block across M and K -> stay resident in VMEM
        pl.BlockSpec((1, tn), lambda i, j, k: (0, j)),
        pl.BlockSpec((1, tn), lambda i, j, k: (0, j)),
    ]

    krp = 0
    if residual is not None:
        res_p = jnp.pad(residual.astype(jnp.float32), ((0, Mp - M), (0, Np - Cout)))
        args.append(res_p)
        in_specs.append(pl.BlockSpec((tm, tn), lambda i, j, k: (i, j)))
    if residual_mm is not None:
        ra, rw, rs, rb = residual_mm
        Kr = ra.shape[1]
        krp = _round_up(Kr, 128)
        args += [
            jnp.pad(ra.astype(jnp.bfloat16), ((0, Mp - M), (0, krp - Kr))),
            jnp.pad(rw.astype(jnp.bfloat16), ((0, krp - Kr), (0, Np - Cout))),
            jnp.pad(rs.astype(jnp.float32).reshape(1, Cout), ((0, 0), (0, Np - Cout))),
            jnp.pad(rb.astype(jnp.float32).reshape(1, Cout), ((0, 0), (0, Np - Cout))),
        ]
        in_specs += [
            pl.BlockSpec((tm, krp), lambda i, j, k: (i, 0)),   # resident across K steps
            pl.BlockSpec((krp, tn), lambda i, j, k: (0, j)),
            pl.BlockSpec((1, tn), lambda i, j, k: (0, j)),
            pl.BlockSpec((1, tn), lambda i, j, k: (0, j)),
        ]

    kernel = _make_kernel(residual is not None, residual_mm is not None, relu)

    out_p = pl.pallas_call(
        kernel,
        out_shape=jax.ShapeDtypeStruct((Mp, Np), out_dtype),
        grid=(Mp // tm, Np // tn, Kp // tk),
        in_specs=in_specs,
        out_specs=pl.BlockSpec((tm, tn), lambda i, j, k: (i, j)),
        scratch_shapes=[pltpu.VMEM((tm, tn), jnp.float32)],
        compiler_params=pltpu.CompilerParams(
            dimension_semantics=("parallel", "parallel", "arbitrary"),
            vmem_limit_bytes=_vmem_limit(tm, tn, tk, krp,
                                         residual is not None,
                                         residual_mm is not None),
        ),
    )(*args)
    return out_p[:M, :Cout]


# ----------------------------------------------------------------------------
# JAX glue: im2col, BN folding, parameter init, forward
# ----------------------------------------------------------------------------
def im2col(x_nhwc, kh, kw, stride, padding):
    """Extract (kh, kw) patches; returns [N*OH*OW, kh*kw*C] and (N, OH, OW)."""
    N, H, W, C = x_nhwc.shape
    xp = jnp.pad(x_nhwc, ((0, 0), (padding, padding), (padding, padding), (0, 0)))
    OH = (H + 2 * padding - kh) // stride + 1
    OW = (W + 2 * padding - kw) // stride + 1
    cols = []
    for i in range(kh):
        for j in range(kw):
            patch = lax.slice(
                xp,
                (0, i, j, 0),
                (N, i + (OH - 1) * stride + 1, j + (OW - 1) * stride + 1, C),
                (1, stride, stride, 1),
            )
            cols.append(patch)
    patches = jnp.concatenate(cols, axis=-1)  # [N, OH, OW, kh*kw*C], (i, j, c) order
    return patches.reshape(N * OH * OW, kh * kw * C), (N, OH, OW)


def fold_bn(conv_bias, bn_params):
    """Fold conv bias + eval-mode BN into per-channel (scale, bias)."""
    gamma, beta, mean, var = bn_params
    s = gamma / jnp.sqrt(var + _BN_EPS)
    b = (conv_bias - mean) * s + beta
    return s, b


def torch_weight_to_matmul(w_oihw):
    """[Cout, Cin, KH, KW] -> [KH*KW*Cin, Cout], matching im2col (i, j, c) order."""
    cout = w_oihw.shape[0]
    return jnp.transpose(w_oihw, (2, 3, 1, 0)).reshape(-1, cout)


def init_basic_block_params(key, in_channels, out_channels, stride):
    ks = jax.random.split(key, 12)

    def bn_params(k):
        kg, kb, km, kv = jax.random.split(k, 4)
        return (
            jax.random.normal(kg, (out_channels,), jnp.float32) * 0.1 + 1.0,  # gamma
            jax.random.normal(kb, (out_channels,), jnp.float32) * 0.1,        # beta
            jax.random.normal(km, (out_channels,), jnp.float32) * 0.1,        # running_mean
            jax.random.uniform(kv, (out_channels,), jnp.float32, 0.5, 1.5),   # running_var
        )

    params = {
        "w1": jax.random.normal(ks[0], (out_channels, in_channels, 3, 3), jnp.float32) * 0.1,
        "b1": jax.random.normal(ks[1], (out_channels,), jnp.float32) * 0.1,
        "bn1": bn_params(ks[2]),
        "w2": jax.random.normal(ks[3], (out_channels, out_channels, 3, 3), jnp.float32) * 0.1,
        "b2": jax.random.normal(ks[4], (out_channels,), jnp.float32) * 0.1,
        "bn2": bn_params(ks[5]),
    }
    if stride != 1 or in_channels != out_channels:
        params.update(
            {
                "ws": jax.random.normal(ks[6], (out_channels, in_channels, 1, 1), jnp.float32) * 0.1,
                "bs": jax.random.normal(ks[7], (out_channels,), jnp.float32) * 0.1,
                "bns": bn_params(ks[8]),
            }
        )
    return params


def basic_block_forward(x_nchw, params, stride):
    x_nhwc = jnp.transpose(x_nchw, (0, 2, 3, 1))   # NCHW -> NHWC (f32)
    x_bf16 = x_nhwc.astype(jnp.bfloat16)           # MXU operand dtype (halves im2col bytes)
    cin = x_nhwc.shape[-1]
    cout = params["w1"].shape[0]

    # conv1 + bn1 + relu   (bf16 output feeds conv2's im2col directly)
    a1, (N, OH, OW) = im2col(x_bf16, 3, 3, stride, 1)
    w1 = torch_weight_to_matmul(params["w1"])
    s1, b1 = fold_bn(params["b1"], params["bn1"])
    out1 = fused_conv_matmul(a1, w1, s1, b1, relu=True, out_dtype=jnp.bfloat16)
    out1_nhwc = out1.reshape(N, OH, OW, cout)

    # conv2 + bn2 (+ fused shortcut) + residual add + relu -- one kernel
    a2, _ = im2col(out1_nhwc, 3, 3, 1, 1)
    w2 = torch_weight_to_matmul(params["w2"])
    s2, b2 = fold_bn(params["b2"], params["bn2"])

    if stride != 1 or cin != cout:
        # projection shortcut: fuse the 1x1 conv + BN matmul into conv2's epilogue
        a_s, _ = im2col(x_bf16, 1, 1, stride, 0)
        ws = torch_weight_to_matmul(params["ws"])
        ss, bs = fold_bn(params["bs"], params["bns"])
        out2 = fused_conv_matmul(a2, w2, s2, b2, residual_mm=(a_s, ws, ss, bs),
                                 relu=True, out_dtype=jnp.float32)
    else:
        identity = x_nhwc.reshape(-1, cout)        # f32 identity residual
        out2 = fused_conv_matmul(a2, w2, s2, b2, residual=identity,
                                 relu=True, out_dtype=jnp.float32)

    out_nhwc = out2.reshape(N, OH, OW, cout)
    return jnp.transpose(out_nhwc, (0, 3, 1, 2))   # back to NCHW


# ----------------------------------------------------------------------------
# Pure-JAX reference (lax.conv) for correctness check
# ----------------------------------------------------------------------------
def ref_forward(x_nchw, params, stride, compute_dtype=jnp.float32):
    """Reference; compute_dtype=bf16 mirrors the kernel's MXU operand precision."""
    def conv(x, w, b, s, p):
        y = lax.conv_general_dilated(
            x.astype(compute_dtype), w.astype(compute_dtype), (s, s), ((p, p), (p, p)),
            dimension_numbers=("NCHW", "OIHW", "NCHW"),
            preferred_element_type=jnp.float32,
        )
        return y + b.reshape(1, -1, 1, 1)

    def bn(x, bp):
        g, be, m, v = bp
        sc = (g / jnp.sqrt(v + _BN_EPS)).reshape(1, -1, 1, 1)
        return (x - m.reshape(1, -1, 1, 1)) * sc + be.reshape(1, -1, 1, 1)

    cin, cout = x_nchw.shape[1], params["w1"].shape[0]
    out = jax.nn.relu(bn(conv(x_nchw, params["w1"], params["b1"], stride, 1), params["bn1"]))
    out = bn(conv(out, params["w2"], params["b2"], 1, 1), params["bn2"])
    if stride != 1 or cin != cout:
        sc = bn(conv(x_nchw, params["ws"], params["bs"], stride, 0), params["bns"])
    else:
        sc = x_nchw
    return jax.nn.relu(out + sc)


if __name__ == "__main__":
    in_channels, out_channels, stride = 4, 8, 2   # exercises the fused 1x1 shortcut path
    key = jax.random.PRNGKey(0)
    kx, kp = jax.random.split(key)
    x = jax.random.normal(kx, (2, in_channels, 16, 16), jnp.float32)  # NCHW, like PyTorch
    params = init_basic_block_params(kp, in_channels, out_channels, stride)

    fwd = jax.jit(basic_block_forward, static_argnums=2)
    out = jax.block_until_ready(fwd(x, params, stride))

    # tight check vs a reference that also uses bf16 conv operands (f32 accumulation)
    ref_bf16 = jax.block_until_ready(ref_forward(x, params, stride, jnp.bfloat16))
    # sanity check vs the full-f32 reference (gap is just bf16 operand rounding)
    ref_f32 = jax.block_until_ready(ref_forward(x, params, stride, jnp.float32))

    assert out.shape == ref_f32.shape == (2, out_channels, 8, 8)
    assert jnp.allclose(out, ref_bf16, atol=1e-2, rtol=1e-2), "mismatch vs bf16 reference"
    assert jnp.allclose(out, ref_f32, atol=1e-1, rtol=1e-1), "mismatch vs f32 reference"

    print("KERNEL_OK")
</pallas_src>

<mosaic_0001>
module attributes {stable_mosaic.version = 11 : i64} {
  func.func @kernel(%arg0: i32, %arg1: i32, %arg2: i32, %arg3: memref<128x128xbf16, #tpu.memory_space<vmem>>, %arg4: memref<128x128xbf16, #tpu.memory_space<vmem>>, %arg5: memref<1x128xf32, #tpu.memory_space<vmem>>, %arg6: memref<1x128xf32, #tpu.memory_space<vmem>>, %arg7: memref<128x128xbf16, #tpu.memory_space<vmem>>, %arg8: memref<128x128xf32, #tpu.memory_space<vmem>>) attributes {dimension_semantics = [#tpu.dimension_semantics<parallel>, #tpu.dimension_semantics<parallel>, #tpu.dimension_semantics<arbitrary>], iteration_bounds = array<i64: 1, 1, 1>, scalar_prefetch = 0 : i64, scratch_operands = 1 : i64, tpu.core_type = #tpu.core_type<tc>, window_params = [{transform_indices = @transform_0, window_bounds = array<i64: 128, 128>}, {transform_indices = @transform_1, window_bounds = array<i64: 128, 128>}, {transform_indices = @transform_2, window_bounds = array<i64: 1, 128>}, {transform_indices = @transform_3, window_bounds = array<i64: 1, 128>}, {transform_indices = @transform_4, window_bounds = array<i64: 128, 128>}]} {
    %c0_i32 = arith.constant 0 : i32
    %0 = arith.cmpi eq, %arg2, %c0_i32 : i32
    %1 = arith.extui %0 : i1 to i32
    %c0_i32_0 = arith.constant 0 : i32
    %2 = arith.cmpi ne, %1, %c0_i32_0 : i32
    scf.if %2 {
      %cst_10 = arith.constant 0.000000e+00 : f32
      %12 = vector.broadcast %cst_10 : f32 to vector<128x128xf32>
      %c0_11 = arith.constant 0 : index
      %c0_12 = arith.constant 0 : index
      %13 = vector.load %arg8[%c0_11, %c0_12] : memref<128x128xf32, #tpu.memory_space<vmem>>, vector<128x128xf32>
      tpu.vector_store %arg8[%c0_11, %c0_12], %12 {strides = array<i32>} : memref<128x128xf32, #tpu.memory_space<vmem>>, vector<128x128xf32>,
    } else {
    }
    %c0 = arith.constant 0 : index
    %c0_1 = arith.constant 0 : index
    %3 = vector.load %arg8[%c0, %c0_1] : memref<128x128xf32, #tpu.memory_space<vmem>>, vector<128x128xf32>
    %c0_2 = arith.constant 0 : index
    %c0_3 = arith.constant 0 : index
    %4 = vector.load %arg3[%c0_2, %c0_3] : memref<128x128xbf16, #tpu.memory_space<vmem>>, vector<128x128xbf16>
    %c0_4 = arith.constant 0 : index
    %c0_5 = arith.constant 0 : index
    %5 = vector.load %arg4[%c0_4, %c0_5] : memref<128x128xbf16, #tpu.memory_space<vmem>>, vector<128x128xbf16>
    %cst = arith.constant dense<0.000000e+00> : vector<128x128xf32>
    %6 = tpu.matmul %4, %5, %cst {dimension_numbers = #tpu.dot_dimension_numbers<[1], [0], [0], [1], [0, 0, 1, 1], [], []>} : vector<128x128xbf16>, vector<128x128xbf16>, vector<128x128xf32> -> vector<128x128xf32>
    %7 = arith.addf %3, %6 : vector<128x128xf32>
    %c0_6 = arith.constant 0 : index
    %c0_7 = arith.constant 0 : index
    %8 = vector.load %arg8[%c0_6, %c0_7] : memref<128x128xf32, #tpu.memory_space<vmem>>, vector<128x128xf32>
    tpu.vector_store %arg8[%c0_6, %c0_7], %7 {strides = array<i32>} : memref<128x128xf32, #tpu.memory_space<vmem>>, vector<128x128xf32>,
    %c0_i32_8 = arith.constant 0 : i32
    %9 = arith.cmpi eq, %arg2, %c0_i32_8 : i32
    %10 = arith.extui %9 : i1 to i32
    %c0_i32_9 = arith.constant 0 : i32
    %11 = arith.cmpi ne, %10, %c0_i32_9 : i32
    scf.if %11 {
      %c0_10 = arith.constant 0 : index
      %c0_11 = arith.constant 0 : index
      %12 = vector.load %arg8[%c0_10, %c0_11] : memref<128x128xf32, #tpu.memory_space<vmem>>, vector<128x128xf32>
      %c0_12 = arith.constant 0 : index
      %c0_13 = arith.constant 0 : index
      %13 = vector.load %arg5[%c0_12, %c0_13] : memref<1x128xf32, #tpu.memory_space<vmem>>, vector<1x128xf32>
      %14 = vector.broadcast %13 : vector<1x128xf32> to vector<128x128xf32>
      %15 = arith.mulf %12, %14 : vector<128x128xf32>
      %c0_14 = arith.constant 0 : index
      %c0_15 = arith.constant 0 : index
      %16 = vector.load %arg6[%c0_14, %c0_15] : memref<1x128xf32, #tpu.memory_space<vmem>>, vector<1x128xf32>
      %17 = vector.broadcast %16 : vector<1x128xf32> to vector<128x128xf32>
      %18 = arith.addf %15, %17 : vector<128x128xf32>
      %cst_16 = arith.constant 0.000000e+00 : f32
      %19 = vector.broadcast %cst_16 : f32 to vector<128x128xf32>
      %20 = arith.maximumf %18, %19 : vector<128x128xf32>
      %21 = arith.truncf %20 : vector<128x128xf32> to vector<128x128xbf16>
      %c0_17 = arith.constant 0 : index
      %c0_18 = arith.constant 0 : index
      %22 = vector.load %arg7[%c0_17, %c0_18] : memref<128x128xbf16, #tpu.memory_space<vmem>>, vector<128x128xbf16>
      tpu.vector_store %arg7[%c0_17, %c0_18], %21 {strides = array<i32>} : memref<128x128xbf16, #tpu.memory_space<vmem>>, vector<128x128xbf16>,
    } else {
    }
    return
  }
  func.func @transform_0(%arg0: i32, %arg1: i32, %arg2: i32) -> (i32, i32) {
    %c0_i32 = arith.constant 0 : i32
    return %arg0, %arg2 : i32, i32
  }
  func.func @transform_1(%arg0: i32, %arg1: i32, %arg2: i32) -> (i32, i32) {
    %c0_i32 = arith.constant 0 : i32
    return %arg2, %arg1 : i32, i32
  }
  func.func @transform_2(%arg0: i32, %arg1: i32, %arg2: i32) -> (i32, i32) {
    %c0_i32 = arith.constant 0 : i32
    %c0_i32_0 = arith.constant 0 : i32
    return %c0_i32, %arg1 : i32, i32
  }
  func.func @transform_3(%arg0: i32, %arg1: i32, %arg2: i32) -> (i32, i32) {
    %c0_i32 = arith.constant 0 : i32
    %c0_i32_0 = arith.constant 0 : i32
    return %c0_i32, %arg1 : i32, i32
  }
  func.func @transform_4(%arg0: i32, %arg1: i32, %arg2: i32) -> (i32, i32) {
    %c0_i32 = arith.constant 0 : i32
    return %arg0, %arg1 : i32, i32
  }
}

module attributes {stable_mosaic.version = 11 : i64} {
  func.func @kernel(%arg0: i32, %arg1: i32, %arg2: i32, %arg3: memref<128x128xbf16, #tpu.memory_space<vmem>>, %arg4: memref<128x128xbf16, #tpu.memory_space<vmem>>, %arg5: memref<1x128xf32, #tpu.memory_space<vmem>>, %arg6: memref<1x128xf32, #tpu.memory_space<vmem>>, %arg7: memref<128x128xbf16, #tpu.memory_space<vmem>>, %arg8: memref<128x128xbf16, #tpu.memory_space<vmem>>, %arg9: memref<1x128xf32, #tpu.memory_space<vmem>>, %arg10: memref<1x128xf32, #tpu.memory_space<vmem>>, %arg11: memref<128x128xf32, #tpu.memory_space<vmem>>, %arg12: memref<128x128xf32, #tpu.memory_space<vmem>>) attributes {dimension_semantics = [#tpu.dimension_semantics<parallel>, #tpu.dimension_semantics<parallel>, #tpu.dimension_semantics<arbitrary>], iteration_bounds = array<i64: 1, 1, 1>, scalar_prefetch = 0 : i64, scratch_operands = 1 : i64, tpu.core_type = #tpu.core_type<tc>, window_params = [{transform_indices = @transform_0, window_bounds = array<i64: 128, 128>}, {transform_indices = @transform_1, window_bounds = array<i64: 128, 128>}, {transform_indices = @transform_2, window_bounds = array<i64: 1, 128>}, {transform_indices = @transform_3, window_bounds = array<i64: 1, 128>}, {transform_indices = @transform_4, window_bounds = array<i64: 128, 128>}, {transform_indices = @transform_5, window_bounds = array<i64: 128, 128>}, {transform_indices = @transform_6, window_bounds = array<i64: 1, 128>}, {transform_indices = @transform_7, window_bounds = array<i64: 1, 128>}, {transform_indices = @transform_8, window_bounds = array<i64: 128, 128>}]} {
    %c0_i32 = arith.constant 0 : i32
    %0 = arith.cmpi eq, %arg2, %c0_i32 : i32
    %1 = arith.extui %0 : i1 to i32
    %c0_i32_0 = arith.constant 0 : i32
    %2 = arith.cmpi ne, %1, %c0_i32_0 : i32
    scf.if %2 {
      %cst_10 = arith.constant 0.000000e+00 : f32
      %12 = vector.broadcast %cst_10 : f32 to vector<128x128xf32>
      %c0_11 = arith.constant 0 : index
      %c0_12 = arith.constant 0 : index
      %13 = vector.load %arg12[%c0_11, %c0_12] : memref<128x128xf32, #tpu.memory_space<vmem>>, vector<128x128xf32>
      tpu.vector_store %arg12[%c0_11, %c0_12], %12 {strides = array<i32>} : memref<128x128xf32, #tpu.memory_space<vmem>>, vector<128x128xf32>,
    } else {
    }
    %c0 = arith.constant 0 : index
    %c0_1 = arith.constant 0 : index
    %3 = vector.load %arg12[%c0, %c0_1] : memref<128x128xf32, #tpu.memory_space<vmem>>, vector<128x128xf32>
    %c0_2 = arith.constant 0 : index
    %c0_3 = arith.constant 0 : index
    %4 = vector.load %arg3[%c0_2, %c0_3] : memref<128x128xbf16, #tpu.memory_space<vmem>>, vector<128x128xbf16>
    %c0_4 = arith.constant 0 : index
    %c0_5 = arith.constant 0 : index
    %5 = vector.load %arg4[%c0_4, %c0_5] : memref<128x128xbf16, #tpu.memory_space<vmem>>, vector<128x128xbf16>
    %cst = arith.constant dense<0.000000e+00> : vector<128x128xf32>
    %6 = tpu.matmul %4, %5, %cst {dimension_numbers = #tpu.dot_dimension_numbers<[1], [0], [0], [1], [0, 0, 1, 1], [], []>} : vector<128x128xbf16>, vector<128x128xbf16>, vector<128x128xf32> -> vector<128x128xf32>
    %7 = arith.addf %3, %6 : vector<128x128xf32>
    %c0_6 = arith.constant 0 : index
    %c0_7 = arith.constant 0 : index
    %8 = vector.load %arg12[%c0_6, %c0_7] : memref<128x128xf32, #tpu.memory_space<vmem>>, vector<128x128xf32>
    tpu.vector_store %arg12[%c0_6, %c0_7], %7 {strides = array<i32>} : memref<128x128xf32, #tpu.memory_space<vmem>>, vector<128x128xf32>,
    %c0_i32_8 = arith.constant 0 : i32
    %9 = arith.cmpi eq, %arg2, %c0_i32_8 : i32
    %10 = arith.extui %9 : i1 to i32
    %c0_i32_9 = arith.constant 0 : i32
    %11 = arith.cmpi ne, %10, %c0_i32_9 : i32
    scf.if %11 {
      %c0_10 = arith.constant 0 : index
      %c0_11 = arith.constant 0 : index
      %12 = vector.load %arg12[%c0_10, %c0_11] : memref<128x128xf32, #tpu.memory_space<vmem>>, vector<128x128xf32>
      %c0_12 = arith.constant 0 : index
      %c0_13 = arith.constant 0 : index
      %13 = vector.load %arg5[%c0_12, %c0_13] : memref<1x128xf32, #tpu.memory_space<vmem>>, vector<1x128xf32>
      %14 = vector.broadcast %13 : vector<1x128xf32> to vector<128x128xf32>
      %15 = arith.mulf %12, %14 : vector<128x128xf32>
      %c0_14 = arith.constant 0 : index
      %c0_15 = arith.constant 0 : index
      %16 = vector.load %arg6[%c0_14, %c0_15] : memref<1x128xf32, #tpu.memory_space<vmem>>, vector<1x128xf32>
      %17 = vector.broadcast %16 : vector<1x128xf32> to vector<128x128xf32>
      %18 = arith.addf %15, %17 : vector<128x128xf32>
      %c0_16 = arith.constant 0 : index
      %c0_17 = arith.constant 0 : index
      %19 = vector.load %arg7[%c0_16, %c0_17] : memref<128x128xbf16, #tpu.memory_space<vmem>>, vector<128x128xbf16>
      %c0_18 = arith.constant 0 : index
      %c0_19 = arith.constant 0 : index
      %20 = vector.load %arg8[%c0_18, %c0_19] : memref<128x128xbf16, #tpu.memory_space<vmem>>, vector<128x128xbf16>
      %cst_20 = arith.constant dense<0.000000e+00> : vector<128x128xf32>
      %21 = tpu.matmul %19, %20, %cst_20 {dimension_numbers = #tpu.dot_dimension_numbers<[1], [0], [0], [1], [0, 0, 1, 1], [], []>} : vector<128x128xbf16>, vector<128x128xbf16>, vector<128x128xf32> -> vector<128x128xf32>
      %c0_21 = arith.constant 0 : index
      %c0_22 = arith.constant 0 : index
      %22 = vector.load %arg9[%c0_21, %c0_22] : memref<1x128xf32, #tpu.memory_space<vmem>>, vector<1x128xf32>
      %23 = vector.broadcast %22 : vector<1x128xf32> to vector<128x128xf32>
      %24 = arith.mulf %21, %23 : vector<128x128xf32>
      %25 = arith.addf %18, %24 : vector<128x128xf32>
      %c0_23 = arith.constant 0 : index
      %c0_24 = arith.constant 0 : index
      %26 = vector.load %arg10[%c0_23, %c0_24] : memref<1x128xf32, #tpu.memory_space<vmem>>, vector<1x128xf32>
      %27 = vector.broadcast %26 : vector<1x128xf32> to vector<128x128xf32>
      %28 = arith.addf %25, %27 : vector<128x128xf32>
      %cst_25 = arith.constant 0.000000e+00 : f32
      %29 = vector.broadcast %cst_25 : f32 to vector<128x128xf32>
      %30 = arith.maximumf %28, %29 : vector<128x128xf32>
      %c0_26 = arith.constant 0 : index
      %c0_27 = arith.constant 0 : index
      %31 = vector.load %arg11[%c0_26, %c0_27] : memref<128x128xf32, #tpu.memory_space<vmem>>, vector<128x128xf32>
      tpu.vector_store %arg11[%c0_26, %c0_27], %30 {strides = array<i32>} : memref<128x128xf32, #tpu.memory_space<vmem>>, vector<128x128xf32>,
    } else {
    }
    return
  }
  func.func @transform_0(%arg0: i32, %arg1: i32, %arg2: i32) -> (i32, i32) {
    %c0_i32 = arith.constant 0 : i32
    return %arg0, %arg2 : i32, i32
  }
  func.func @transform_1(%arg0: i32, %arg1: i32, %arg2: i32) -> (i32, i32) {
    %c0_i32 = arith.constant 0 : i32
    return %arg2, %arg1 : i32, i32
  }
  func.func @transform_2(%arg0: i32, %arg1: i32, %arg2: i32) -> (i32, i32) {
    %c0_i32 = arith.constant 0 : i32
    %c0_i32_0 = arith.constant 0 : i32
    return %c0_i32, %arg1 : i32, i32
  }
  func.func @transform_3(%arg0: i32, %arg1: i32, %arg2: i32) -> (i32, i32) {
    %c0_i32 = arith.constant 0 : i32
    %c0_i32_0 = arith.constant 0 : i32
    return %c0_i32, %arg1 : i32, i32
  }
  func.func @transform_4(%arg0: i32, %arg1: i32, %arg2: i32) -> (i32, i32) {
    %c0_i32 = arith.constant 0 : i32
    %c0_i32_0 = arith.constant 0 : i32
    return %arg0, %c0_i32 : i32, i32
  }
  func.func @transform_5(%arg0: i32, %arg1: i32, %arg2: i32) -> (i32, i32) {
    %c0_i32 = arith.constant 0 : i32
    %c0_i32_0 = arith.constant 0 : i32
    return %c0_i32, %arg1 : i32, i32
  }
  func.func @transform_6(%arg0: i32, %arg1: i32, %arg2: i32) -> (i32, i32) {
    %c0_i32 = arith.constant 0 : i32
    %c0_i32_0 = arith.constant 0 : i32
    return %c0_i32, %arg1 : i32, i32
  }
  func.func @transform_7(%arg0: i32, %arg1: i32, %arg2: i32) -> (i32, i32) {
    %c0_i32 = arith.constant 0 : i32
    %c0_i32_0 = arith.constant 0 : i32
    return %c0_i32, %arg1 : i32, i32
  }
  func.func @transform_8(%arg0: i32, %arg1: i32, %arg2: i32) -> (i32, i32) {
    %c0_i32 = arith.constant 0 : i32
    return %arg0, %arg1 : i32, i32
  }
}

</mosaic_0001>

<llo_original>
// kernel: basic_block_forward.2
$region0: #{basic_block_forward.2}
  #allocation0 [shape = 'u32[]', space=smem, size = 0x4, offset = 0x4, fixed_abs, tag = 'smem constant byte address 0x4 - core index']
  #allocation1 [shape = 'u32[72,128]{1,0:T(1,128)}', space=vmem, size = 0x9000, scoped, tag = 'internal scratch']
  #allocation2 [shape = 'f32[128,128]{1,0:T(8,128)}', space=vmem, size = 0x10000, scoped, tag = 'scratch operand']
  %s0 = inlined_call_operand.vmem [shape: bf16[128,128], index: 0, kind: input, shape index: {}]
  %s1 = inlined_call_operand.vmem [shape: bf16[128,128], index: 1, kind: input, shape index: {}]
  %s2 = inlined_call_operand.vmem [shape: f32[1,128], index: 2, kind: input, shape index: {}]
  %s3 = inlined_call_operand.vmem [shape: f32[1,128], index: 3, kind: input, shape index: {}]
  %s4 = inlined_call_operand.vmem [shape: bf16[128,128], index: 4, kind: output, shape index: {}]
  %s5 = sld [smem:[#allocation0]]
  $region34: #{basic_block_forward.2} parent=0
    _
  %s7 = ssub.s32 1, %s5
  %s8 = scalar_select 0, %s7, %s5
  // Predicated region
  $region2: #{basic_block_forward.2} parent=0 // pred_check
    _
  $region3: #{basic_block_forward.2} parent=0 // pred_check_branch
    %10 = sbr.rel (0) target = $region5
  $region4: #{basic_block_forward.2} parent=0 // pred_region
    _
  $region5: #{basic_block_forward.2} parent=0 // pred_fallthru
    _
  // Predicated region
  $region6: #{basic_block_forward.2} parent=0 // pred_check
    _
  $region7: #{basic_block_forward.2} parent=0 // pred_check_branch
    %12 = sbr.rel (0) target = $region9
  $region8: #{basic_block_forward.2} parent=0 // pred_region
    _
  $region9: #{basic_block_forward.2} parent=0 // pred_fallthru
    _
  // Predicated region
  $region10: #{basic_block_forward.2} parent=0 // pred_check
    _
  $region11: #{basic_block_forward.2} parent=0 // pred_check_branch
    %14 = sbr.rel (0) target = $region13
  $region12: #{basic_block_forward.2} parent=0 // pred_region
    _
  $region13: #{basic_block_forward.2} parent=0 // pred_fallthru
    _
  // Predicated region
  $region14: #{basic_block_forward.2} parent=0 // pred_check
    _
  $region15: #{basic_block_forward.2} parent=0 // pred_check_branch
    %16 = sbr.rel (0) target = $region17
  $region16: #{basic_block_forward.2} parent=0 // pred_region
    _
  $region17: #{basic_block_forward.2} parent=0 // pred_fallthru
    _
  %p17 = scmp.eq.s32.totalorder 0, 0
  // Predicated region
  $region18: #{basic_block_forward.2} parent=0 // pred_check
    %p18 = pneg %p17
  $region19: #{basic_block_forward.2} parent=0 // pred_check_branch
    %20 = sbr.rel (%p18) target = $region21
  $region20: #{basic_block_forward.2} parent=0 // pred_region
    %21 = vst [vmem:[#allocation2] sm:$0xff] 0.0
    %22 = vst [vmem:[#allocation2 + $0x8] sm:$0xff] 0.0
    %23 = vst [vmem:[#allocation2 + $0x10] sm:$0xff] 0.0
    %24 = vst [vmem:[#allocation2 + $0x18] sm:$0xff] 0.0
    %25 = vst [vmem:[#allocation2 + $0x20] sm:$0xff] 0.0
    %26 = vst [vmem:[#allocation2 + $0x28] sm:$0xff] 0.0
    %27 = vst [vmem:[#allocation2 + $0x30] sm:$0xff] 0.0
    %28 = vst [vmem:[#allocation2 + $0x38] sm:$0xff] 0.0
    %29 = vst [vmem:[#allocation2 + $0x40] sm:$0xff] 0.0
    %30 = vst [vmem:[#allocation2 + $0x48] sm:$0xff] 0.0
    %31 = vst [vmem:[#allocation2 + $0x50] sm:$0xff] 0.0
    %32 = vst [vmem:[#allocation2 + $0x58] sm:$0xff] 0.0
    %33 = vst [vmem:[#allocation2 + $0x60] sm:$0xff] 0.0
    %34 = vst [vmem:[#allocation2 + $0x68] sm:$0xff] 0.0
    %35 = vst [vmem:[#allocation2 + $0x70] sm:$0xff] 0.0
    %36 = vst [vmem:[#allocation2 + $0x78] sm:$0xff] 0.0
  $region21: #{basic_block_forward.2} parent=0 // pred_fallthru
    _
  %v37 = vld [vmem:[#allocation2] sm:$0xff]
  %v38 = vld [vmem:[#allocation2 + $0x8] sm:$0xff]
  %v39 = vld [vmem:[#allocation2 + $0x10] sm:$0xff]
  %v40 = vld [vmem:[#allocation2 + $0x18] sm:$0xff]
  %v41 = vld [vmem:[#allocation2 + $0x20] sm:$0xff]
  %v42 = vld [vmem:[#allocation2 + $0x28] sm:$0xff]
  %v43 = vld [vmem:[#allocation2 + $0x30] sm:$0xff]
  %v44 = vld [vmem:[#allocation2 + $0x38] sm:$0xff]
  %v45 = vld [vmem:[#allocation2 + $0x40] sm:$0xff]
  %v46 = vld [vmem:[#allocation2 + $0x48] sm:$0xff]
  %v47 = vld [vmem:[#allocation2 + $0x50] sm:$0xff]
  %v48 = vld [vmem:[#allocation2 + $0x58] sm:$0xff]
  %v49 = vld [vmem:[#allocation2 + $0x60] sm:$0xff]
  %v50 = vld [vmem:[#allocation2 + $0x68] sm:$0xff]
  %v51 = vld [vmem:[#allocation2 + $0x70] sm:$0xff]
  %v52 = vld [vmem:[#allocation2 + $0x78] sm:$0xff]
  %v53 = vld [vmem:[%s0] sm:$0xf]
  %v54 = vld [vmem:[%s0 + $0x4] sm:$0xf]
  %v55 = vld [vmem:[%s0 + $0x8] sm:$0xf]
  %v56 = vld [vmem:[%s0 + $0xc] sm:$0xf]
  %v57 = vld [vmem:[%s0 + $0x10] sm:$0xf]
  %v58 = vld [vmem:[%s0 + $0x14] sm:$0xf]
  %v59 = vld [vmem:[%s0 + $0x18] sm:$0xf]
  %v60 = vld [vmem:[%s0 + $0x1c] sm:$0xf]
  %v61 = vld [vmem:[%s0 + $0x20] sm:$0xf]
  %v62 = vld [vmem:[%s0 + $0x24] sm:$0xf]
  %v63 = vld [vmem:[%s0 + $0x28] sm:$0xf]
  %v64 = vld [vmem:[%s0 + $0x2c] sm:$0xf]
  %v65 = vld [vmem:[%s0 + $0x30] sm:$0xf]
  %v66 = vld [vmem:[%s0 + $0x34] sm:$0xf]
  %v67 = vld [vmem:[%s0 + $0x38] sm:$0xf]
  %v68 = vld [vmem:[%s0 + $0x3c] sm:$0xf]
  %v69 = vld [vmem:[%s1] sm:$0xf]
  %v70 = vld [vmem:[%s1 + $0x4] sm:$0xf]
  %v71 = vld [vmem:[%s1 + $0x8] sm:$0xf]
  %v72 = vld [vmem:[%s1 + $0xc] sm:$0xf]
  %v73 = vld [vmem:[%s1 + $0x10] sm:$0xf]
  %v74 = vld [vmem:[%s1 + $0x14] sm:$0xf]
  %v75 = vld [vmem:[%s1 + $0x18] sm:$0xf]
  %v76 = vld [vmem:[%s1 + $0x1c] sm:$0xf]
  %v77 = vld [vmem:[%s1 + $0x20] sm:$0xf]
  %v78 = vld [vmem:[%s1 + $0x24] sm:$0xf]
  %v79 = vld [vmem:[%s1 + $0x28] sm:$0xf]
  %v80 = vld [vmem:[%s1 + $0x2c] sm:$0xf]
  %v81 = vld [vmem:[%s1 + $0x30] sm:$0xf]
  %v82 = vld [vmem:[%s1 + $0x34] sm:$0xf]
  %v83 = vld [vmem:[%s1 + $0x38] sm:$0xf]
  %v84 = vld [vmem:[%s1 + $0x3c] sm:$0xf]
  %v101 = vunpack.c.l.b16 %v53
  %v102 = vunpack.c.l.b16 %v54
  %v103 = vunpack.c.l.b16 %v55
  %v104 = vunpack.c.l.b16 %v56
  %v105 = vunpack.c.l.b16 %v57
  %v106 = vunpack.c.l.b16 %v58
  %v107 = vunpack.c.l.b16 %v59
  %v108 = vunpack.c.l.b16 %v60
  %v109 = vunpack.c.l.b16 %v61
  %v110 = vunpack.c.l.b16 %v62
  %v111 = vunpack.c.l.b16 %v63
  %v112 = vunpack.c.l.b16 %v64
  %v113 = vunpack.c.l.b16 %v65
  %v114 = vunpack.c.l.b16 %v66
  %v115 = vunpack.c.l.b16 %v67
  %v116 = vunpack.c.l.b16 %v68
  %v117 = vpack.c.b16 %v102, %v101
  %v118 = vpack.c.b16 %v104, %v103
  %v119 = vpack.c.b16 %v106, %v105
  %v120 = vpack.c.b16 %v108, %v107
  %v121 = vpack.c.b16 %v110, %v109
  %v122 = vpack.c.b16 %v112, %v111
  %v123 = vpack.c.b16 %v114, %v113
  %v124 = vpack.c.b16 %v116, %v115
  %v149 = vunpack.c.l.b16 %v69
  %v150 = vunpack.c.l.b16 %v70
  %v151 = vunpack.c.l.b16 %v71
  %v152 = vunpack.c.l.b16 %v72
  %v153 = vunpack.c.l.b16 %v73
  %v154 = vunpack.c.l.b16 %v74
  %v155 = vunpack.c.l.b16 %v75
  %v156 = vunpack.c.l.b16 %v76
  %v157 = vunpack.c.l.b16 %v77
  %v158 = vunpack.c.l.b16 %v78
  %v159 = vunpack.c.l.b16 %v79
  %v160 = vunpack.c.l.b16 %v80
  %v161 = vunpack.c.l.b16 %v81
  %v162 = vunpack.c.l.b16 %v82
  %v163 = vunpack.c.l.b16 %v83
  %v164 = vunpack.c.l.b16 %v84
  %v165 = vpack.c.b16 %v150, %v149
  %v166 = vpack.c.b16 %v152, %v151
  %v167 = vpack.c.b16 %v154, %v153
  %v168 = vpack.c.b16 %v156, %v155
  %v169 = vpack.c.b16 %v158, %v157
  %v170 = vpack.c.b16 %v160, %v159
  %v171 = vpack.c.b16 %v162, %v161
  %v172 = vpack.c.b16 %v164, %v163
  %181 = vmatpush.bf16.msra.mxu0 %v172
  %182 = vmatpush.bf16.msra.mxu0 %v171
  %183 = vmatpush.bf16.msra.mxu0 %v170
  %184 = vmatpush.bf16.msra.mxu0 %v169
  %185 = vmatpush.bf16.msra.mxu0 %v168
  %186 = vmatpush.bf16.msra.mxu0 %v167
  %187 = vmatpush.bf16.msra.mxu0 %v166
  %188 = vmatpush.bf16.msra.mxu0 %v165
  %189 = vmatmul.bf16.gmra.mxu0 %v117
  %v190 = vpop.f32.mrf.mxu0
  %v191 = vadd.f32 0.0, %v190
  %v192 = vpop.f32.mrf.mxu0
  %v193 = vadd.f32 0.0, %v192
  %194 = vmatmul.bf16.gmra.mxu0 %v118
  %v195 = vpop.f32.mrf.mxu0
  %v196 = vadd.f32 0.0, %v195
  %v197 = vpop.f32.mrf.mxu0
  %v198 = vadd.f32 0.0, %v197
  %199 = vmatmul.bf16.gmra.mxu0 %v119
  %v200 = vpop.f32.mrf.mxu0
  %v201 = vadd.f32 0.0, %v200
  %v202 = vpop.f32.mrf.mxu0
  %v203 = vadd.f32 0.0, %v202
  %204 = vmatmul.bf16.gmra.mxu0 %v120
  %v205 = vpop.f32.mrf.mxu0
  %v206 = vadd.f32 0.0, %v205
  %v207 = vpop.f32.mrf.mxu0
  %v208 = vadd.f32 0.0, %v207
  %209 = vmatmul.bf16.gmra.mxu0 %v121
  %v210 = vpop.f32.mrf.mxu0
  %v211 = vadd.f32 0.0, %v210
  %v212 = vpop.f32.mrf.mxu0
  %v213 = vadd.f32 0.0, %v212
  %214 = vmatmul.bf16.gmra.mxu0 %v122
  %v215 = vpop.f32.mrf.mxu0
  %v216 = vadd.f32 0.0, %v215
  %v217 = vpop.f32.mrf.mxu0
  %v218 = vadd.f32 0.0, %v217
  %219 = vmatmul.bf16.gmra.mxu0 %v123
  %v220 = vpop.f32.mrf.mxu0
  %v221 = vadd.f32 0.0, %v220
  %v222 = vpop.f32.mrf.mxu0
  %v223 = vadd.f32 0.0, %v222
  %224 = vmatmul.bf16.gmra.mxu0 %v124
  %v225 = vpop.f32.mrf.mxu0
  %v226 = vadd.f32 0.0, %v225
  %v227 = vpop.f32.mrf.mxu0
  %v228 = vadd.f32 0.0, %v227
  %229 = vdwg.mxu0
  %v230 = vadd.f32 %v37, %v191
  %v231 = vadd.f32 %v38, %v193
  %v232 = vadd.f32 %v39, %v196
  %v233 = vadd.f32 %v40, %v198
  %v234 = vadd.f32 %v41, %v201
  %v235 = vadd.f32 %v42, %v203
  %v236 = vadd.f32 %v43, %v206
  %v237 = vadd.f32 %v44, %v208
  %v238 = vadd.f32 %v45, %v211
  %v239 = vadd.f32 %v46, %v213
  %v240 = vadd.f32 %v47, %v216
  %v241 = vadd.f32 %v48, %v218
  %v242 = vadd.f32 %v49, %v221
  %v243 = vadd.f32 %v50, %v223
  %v244 = vadd.f32 %v51, %v226
  %v245 = vadd.f32 %v52, %v228
  %246 = vst [vmem:[#allocation2] sm:$0xff] %v230
  %247 = vst [vmem:[#allocation2 + $0x8] sm:$0xff] %v231
  %248 = vst [vmem:[#allocation2 + $0x10] sm:$0xff] %v232
  %249 = vst [vmem:[#allocation2 + $0x18] sm:$0xff] %v233
  %250 = vst [vmem:[#allocation2 + $0x20] sm:$0xff] %v234
  %251 = vst [vmem:[#allocation2 + $0x28] sm:$0xff] %v235
  %252 = vst [vmem:[#allocation2 + $0x30] sm:$0xff] %v236
  %253 = vst [vmem:[#allocation2 + $0x38] sm:$0xff] %v237
  %254 = vst [vmem:[#allocation2 + $0x40] sm:$0xff] %v238
  %255 = vst [vmem:[#allocation2 + $0x48] sm:$0xff] %v239
  %256 = vst [vmem:[#allocation2 + $0x50] sm:$0xff] %v240
  %257 = vst [vmem:[#allocation2 + $0x58] sm:$0xff] %v241
  %258 = vst [vmem:[#allocation2 + $0x60] sm:$0xff] %v242
  %259 = vst [vmem:[#allocation2 + $0x68] sm:$0xff] %v243
  %260 = vst [vmem:[#allocation2 + $0x70] sm:$0xff] %v244
  %261 = vst [vmem:[#allocation2 + $0x78] sm:$0xff] %v245
  // Predicated region
  $region22: #{basic_block_forward.2} parent=0 // pred_check
    %p262 = pneg %p17
  $region23: #{basic_block_forward.2} parent=0 // pred_check_branch
    %264 = sbr.rel (%p262) target = $region25
  $region24: #{basic_block_forward.2} parent=0 // pred_region
    %v265 = vld [vmem:[#allocation2] sm:$0xff]
    %v266 = vld [vmem:[#allocation2 + $0x8] sm:$0xff]
    %v267 = vld [vmem:[#allocation2 + $0x10] sm:$0xff]
    %v268 = vld [vmem:[#allocation2 + $0x18] sm:$0xff]
    %v269 = vld [vmem:[#allocation2 + $0x20] sm:$0xff]
    %v270 = vld [vmem:[#allocation2 + $0x28] sm:$0xff]
    %v271 = vld [vmem:[#allocation2 + $0x30] sm:$0xff]
    %v272 = vld [vmem:[#allocation2 + $0x38] sm:$0xff]
    %v273 = vld [vmem:[#allocation2 + $0x40] sm:$0xff]
    %v274 = vld [vmem:[#allocation2 + $0x48] sm:$0xff]
    %v275 = vld [vmem:[#allocation2 + $0x50] sm:$0xff]
    %v276 = vld [vmem:[#allocation2 + $0x58] sm:$0xff]
    %v277 = vld [vmem:[#allocation2 + $0x60] sm:$0xff]
    %v278 = vld [vmem:[#allocation2 + $0x68] sm:$0xff]
    %v279 = vld [vmem:[#allocation2 + $0x70] sm:$0xff]
    %v280 = vld [vmem:[#allocation2 + $0x78] sm:$0xff]
    %v281 = vld [vmem:[%s2] sm:$0x1]
    %v283 = vperm.slane %v281, 0
    %v285 = vmul.f32 %v265, %v283
    %v286 = vmul.f32 %v266, %v283
    %v287 = vmul.f32 %v267, %v283
    %v288 = vmul.f32 %v268, %v283
    %v289 = vmul.f32 %v269, %v283
    %v290 = vmul.f32 %v270, %v283
    %v291 = vmul.f32 %v271, %v283
    %v292 = vmul.f32 %v272, %v283
    %v293 = vmul.f32 %v273, %v283
    %v294 = vmul.f32 %v274, %v283
    %v295 = vmul.f32 %v275, %v283
    %v296 = vmul.f32 %v276, %v283
    %v297 = vmul.f32 %v277, %v283
    %v298 = vmul.f32 %v278, %v283
    %v299 = vmul.f32 %v279, %v283
    %v300 = vmul.f32 %v280, %v283
    %v301 = vld [vmem:[%s3] sm:$0x1]
    %v303 = vperm.slane %v301, 0
    %v305 = vadd.f32 %v285, %v303
    %v306 = vadd.f32 %v286, %v303
    %v307 = vadd.f32 %v287, %v303
    %v308 = vadd.f32 %v288, %v303
    %v309 = vadd.f32 %v289, %v303
    %v310 = vadd.f32 %v290, %v303
    %v311 = vadd.f32 %v291, %v303
    %v312 = vadd.f32 %v292, %v303
    %v313 = vadd.f32 %v293, %v303
    %v314 = vadd.f32 %v294, %v303
    %v315 = vadd.f32 %v295, %v303
    %v316 = vadd.f32 %v296, %v303
    %v317 = vadd.f32 %v297, %v303
    %v318 = vadd.f32 %v298, %v303
    %v319 = vadd.f32 %v299, %v303
    %v320 = vadd.f32 %v300, %v303
    %v321 = vmax.f32 %v305, 0.0
    %v322 = vmax.f32 %v306, 0.0
    %v323 = vmax.f32 %v307, 0.0
    %v324 = vmax.f32 %v308, 0.0
    %v325 = vmax.f32 %v309, 0.0
    %v326 = vmax.f32 %v310, 0.0
    %v327 = vmax.f32 %v311, 0.0
    %v328 = vmax.f32 %v312, 0.0
    %v329 = vmax.f32 %v313, 0.0
    %v330 = vmax.f32 %v314, 0.0
    %v331 = vmax.f32 %v315, 0.0
    %v332 = vmax.f32 %v316, 0.0
    %v333 = vmax.f32 %v317, 0.0
    %v334 = vmax.f32 %v318, 0.0
    %v335 = vmax.f32 %v319, 0.0
    %v336 = vmax.f32 %v320, 0.0
    %v337 = vpack.c.bf16 %v321, %v321
    %v338 = vpack.c.bf16 %v322, %v322
    %v339 = vpack.c.bf16 %v323, %v323
    %v340 = vpack.c.bf16 %v324, %v324
    %v341 = vpack.c.bf16 %v325, %v325
    %v342 = vpack.c.bf16 %v326, %v326
    %v343 = vpack.c.bf16 %v327, %v327
    %v344 = vpack.c.bf16 %v328, %v328
    %v345 = vpack.c.bf16 %v329, %v329
    %v346 = vpack.c.bf16 %v330, %v330
    %v347 = vpack.c.bf16 %v331, %v331
    %v348 = vpack.c.bf16 %v332, %v332
    %v349 = vpack.c.bf16 %v333, %v333
    %v350 = vpack.c.bf16 %v334, %v334
    %v351 = vpack.c.bf16 %v335, %v335
    %v352 = vpack.c.bf16 %v336, %v336
    %353 = vst [vmem:[%s4] sm:$0xf] %v337
    %354 = vst [vmem:[%s4 + $0x4] sm:$0xf] %v338
    %355 = vst [vmem:[%s4 + $0x8] sm:$0xf] %v339
    %356 = vst [vmem:[%s4 + $0xc] sm:$0xf] %v340
    %357 = vst [vmem:[%s4 + $0x10] sm:$0xf] %v341
    %358 = vst [vmem:[%s4 + $0x14] sm:$0xf] %v342
    %359 = vst [vmem:[%s4 + $0x18] sm:$0xf] %v343
    %360 = vst [vmem:[%s4 + $0x1c] sm:$0xf] %v344
    %361 = vst [vmem:[%s4 + $0x20] sm:$0xf] %v345
    %362 = vst [vmem:[%s4 + $0x24] sm:$0xf] %v346
    %363 = vst [vmem:[%s4 + $0x28] sm:$0xf] %v347
    %364 = vst [vmem:[%s4 + $0x2c] sm:$0xf] %v348
    %365 = vst [vmem:[%s4 + $0x30] sm:$0xf] %v349
    %366 = vst [vmem:[%s4 + $0x34] sm:$0xf] %v350
    %367 = vst [vmem:[%s4 + $0x38] sm:$0xf] %v351
    %368 = vst [vmem:[%s4 + $0x3c] sm:$0xf] %v352
  $region25: #{basic_block_forward.2} parent=0 // pred_fallthru
    _
  // Predicated region
  $region26: #{basic_block_forward.2} parent=0 // pred_check
    _
  $region27: #{basic_block_forward.2} parent=0 // pred_check_branch
    %370 = sbr.rel (0) target = $region29
  $region28: #{basic_block_forward.2} parent=0 // pred_region
    _
  $region29: #{basic_block_forward.2} parent=0 // pred_fallthru
    _
  // Predicated region
  $region30: #{basic_block_forward.2} parent=0 // pred_check
    _
  $region31: #{basic_block_forward.2} parent=0 // pred_check_branch
    %372 = sbr.rel (0) target = $region33
  $region32: #{basic_block_forward.2} parent=0 // pred_region
    _
  $region33: #{basic_block_forward.2} parent=0 // pred_fallthru
    _

// kernel: basic_block_forward.3
$region0: #{basic_block_forward.3}
  #allocation0 [shape = 'u32[]', space=smem, size = 0x4, offset = 0x4, fixed_abs, tag = 'smem constant byte address 0x4 - core index']
  #allocation1 [shape = 'u32[72,128]{1,0:T(1,128)}', space=vmem, size = 0x9000, scoped, tag = 'internal scratch']
  #allocation2 [shape = 'f32[128,128]{1,0:T(8,128)}', space=vmem, size = 0x10000, scoped, tag = 'scratch operand']
  %s0 = inlined_call_operand.vmem [shape: bf16[128,128], index: 0, kind: input, shape index: {}]
  %s1 = inlined_call_operand.vmem [shape: bf16[128,128], index: 1, kind: input, shape index: {}]
  %s2 = inlined_call_operand.vmem [shape: f32[1,128], index: 2, kind: input, shape index: {}]
  %s3 = inlined_call_operand.vmem [shape: f32[1,128], index: 3, kind: input, shape index: {}]
  %s4 = inlined_call_operand.vmem [shape: bf16[128,128], index: 4, kind: input, shape index: {}]
  %s5 = inlined_call_operand.vmem [shape: bf16[128,128], index: 5, kind: input, shape index: {}]
  %s6 = inlined_call_operand.vmem [shape: f32[1,128], index: 6, kind: input, shape index: {}]
  %s7 = inlined_call_operand.vmem [shape: f32[1,128], index: 7, kind: input, shape index: {}]
  %s8 = inlined_call_operand.vmem [shape: f32[128,128], index: 8, kind: output, shape index: {}]
  %s9 = sld [smem:[#allocation0]]
  $region50: #{basic_block_forward.3} parent=0
    _
  %s11 = ssub.s32 1, %s9
  %s12 = scalar_select 0, %s11, %s9
  // Predicated region
  $region2: #{basic_block_forward.3} parent=0 // pred_check
    _
  $region3: #{basic_block_forward.3} parent=0 // pred_check_branch
    %14 = sbr.rel (0) target = $region5
  $region4: #{basic_block_forward.3} parent=0 // pred_region
    _
  $region5: #{basic_block_forward.3} parent=0 // pred_fallthru
    _
  // Predicated region
  $region6: #{basic_block_forward.3} parent=0 // pred_check
    _
  $region7: #{basic_block_forward.3} parent=0 // pred_check_branch
    %16 = sbr.rel (0) target = $region9
  $region8: #{basic_block_forward.3} parent=0 // pred_region
    _
  $region9: #{basic_block_forward.3} parent=0 // pred_fallthru
    _
  // Predicated region
  $region10: #{basic_block_forward.3} parent=0 // pred_check
    _
  $region11: #{basic_block_forward.3} parent=0 // pred_check_branch
    %18 = sbr.rel (0) target = $region13
  $region12: #{basic_block_forward.3} parent=0 // pred_region
    _
  $region13: #{basic_block_forward.3} parent=0 // pred_fallthru
    _
  // Predicated region
  $region14: #{basic_block_forward.3} parent=0 // pred_check
    _
  $region15: #{basic_block_forward.3} parent=0 // pred_check_branch
    %20 = sbr.rel (0) target = $region17
  $region16: #{basic_block_forward.3} parent=0 // pred_region
    _
  $region17: #{basic_block_forward.3} parent=0 // pred_fallthru
    _
  // Predicated region
  $region18: #{basic_block_forward.3} parent=0 // pred_check
    _
  $region19: #{basic_block_forward.3} parent=0 // pred_check_branch
    %22 = sbr.rel (0) target = $region21
  $region20: #{basic_block_forward.3} parent=0 // pred_region
    _
  $region21: #{basic_block_forward.3} parent=0 // pred_fallthru
    _
  // Predicated region
  $region22: #{basic_block_forward.3} parent=0 // pred_check
    _
  $region23: #{basic_block_forward.3} parent=0 // pred_check_branch
    %24 = sbr.rel (0) target = $region25
  $region24: #{basic_block_forward.3} parent=0 // pred_region
    _
  $region25: #{basic_block_forward.3} parent=0 // pred_fallthru
    _
  // Predicated region
  $region26: #{basic_block_forward.3} parent=0 // pred_check
    _
  $region27: #{basic_block_forward.3} parent=0 // pred_check_branch
    %26 = sbr.rel (0) target = $region29
  $region28: #{basic_block_forward.3} parent=0 // pred_region
    _
  $region29: #{basic_block_forward.3} parent=0 // pred_fallthru
    _
  // Predicated region
  $region30: #{basic_block_forward.3} parent=0 // pred_check
    _
  $region31: #{basic_block_forward.3} parent=0 // pred_check_branch
    %28 = sbr.rel (0) target = $region33
  $region32: #{basic_block_forward.3} parent=0 // pred_region
    _
  $region33: #{basic_block_forward.3} parent=0 // pred_fallthru
    _
  %p29 = scmp.eq.s32.totalorder 0, 0
  // Predicated region
  $region34: #{basic_block_forward.3} parent=0 // pred_check
    %p30 = pneg %p29
  $region35: #{basic_block_forward.3} parent=0 // pred_check_branch
    %32 = sbr.rel (%p30) target = $region37
  $region36: #{basic_block_forward.3} parent=0 // pred_region
    %33 = vst [vmem:[#allocation2] sm:$0xff] 0.0
    %34 = vst [vmem:[#allocation2 + $0x8] sm:$0xff] 0.0
    %35 = vst [vmem:[#allocation2 + $0x10] sm:$0xff] 0.0
    %36 = vst [vmem:[#allocation2 + $0x18] sm:$0xff] 0.0
    %37 = vst [vmem:[#allocation2 + $0x20] sm:$0xff] 0.0
    %38 = vst [vmem:[#allocation2 + $0x28] sm:$0xff] 0.0
    %39 = vst [vmem:[#allocation2 + $0x30] sm:$0xff] 0.0
    %40 = vst [vmem:[#allocation2 + $0x38] sm:$0xff] 0.0
    %41 = vst [vmem:[#allocation2 + $0x40] sm:$0xff] 0.0
    %42 = vst [vmem:[#allocation2 + $0x48] sm:$0xff] 0.0
    %43 = vst [vmem:[#allocation2 + $0x50] sm:$0xff] 0.0
    %44 = vst [vmem:[#allocation2 + $0x58] sm:$0xff] 0.0
    %45 = vst [vmem:[#allocation2 + $0x60] sm:$0xff] 0.0
    %46 = vst [vmem:[#allocation2 + $0x68] sm:$0xff] 0.0
    %47 = vst [vmem:[#allocation2 + $0x70] sm:$0xff] 0.0
    %48 = vst [vmem:[#allocation2 + $0x78] sm:$0xff] 0.0
  $region37: #{basic_block_forward.3} parent=0 // pred_fallthru
    _
  %v49 = vld [vmem:[#allocation2] sm:$0xff]
  %v50 = vld [vmem:[#allocation2 + $0x8] sm:$0xff]
  %v51 = vld [vmem:[#allocation2 + $0x10] sm:$0xff]
  %v52 = vld [vmem:[#allocation2 + $0x18] sm:$0xff]
  %v53 = vld [vmem:[#allocation2 + $0x20] sm:$0xff]
  %v54 = vld [vmem:[#allocation2 + $0x28] sm:$0xff]
  %v55 = vld [vmem:[#allocation2 + $0x30] sm:$0xff]
  %v56 = vld [vmem:[#allocation2 + $0x38] sm:$0xff]
  %v57 = vld [vmem:[#allocation2 + $0x40] sm:$0xff]
  %v58 = vld [vmem:[#allocation2 + $0x48] sm:$0xff]
  %v59 = vld [vmem:[#allocation2 + $0x50] sm:$0xff]
  %v60 = vld [vmem:[#allocation2 + $0x58] sm:$0xff]
  %v61 = vld [vmem:[#allocation2 + $0x60] sm:$0xff]
  %v62 = vld [vmem:[#allocation2 + $0x68] sm:$0xff]
  %v63 = vld [vmem:[#allocation2 + $0x70] sm:$0xff]
  %v64 = vld [vmem:[#allocation2 + $0x78] sm:$0xff]
  %v65 = vld [vmem:[%s0] sm:$0xf]
  %v66 = vld [vmem:[%s0 + $0x4] sm:$0xf]
  %v67 = vld [vmem:[%s0 + $0x8] sm:$0xf]
  %v68 = vld [vmem:[%s0 + $0xc] sm:$0xf]
  %v69 = vld [vmem:[%s0 + $0x10] sm:$0xf]
  %v70 = vld [vmem:[%s0 + $0x14] sm:$0xf]
  %v71 = vld [vmem:[%s0 + $0x18] sm:$0xf]
  %v72 = vld [vmem:[%s0 + $0x1c] sm:$0xf]
  %v73 = vld [vmem:[%s0 + $0x20] sm:$0xf]
  %v74 = vld [vmem:[%s0 + $0x24] sm:$0xf]
  %v75 = vld [vmem:[%s0 + $0x28] sm:$0xf]
  %v76 = vld [vmem:[%s0 + $0x2c] sm:$0xf]
  %v77 = vld [vmem:[%s0 + $0x30] sm:$0xf]
  %v78 = vld [vmem:[%s0 + $0x34] sm:$0xf]
  %v79 = vld [vmem:[%s0 + $0x38] sm:$0xf]
  %v80 = vld [vmem:[%s0 + $0x3c] sm:$0xf]
  %v81 = vld [vmem:[%s1] sm:$0xf]
  %v82 = vld [vmem:[%s1 + $0x4] sm:$0xf]
  %v83 = vld [vmem:[%s1 + $0x8] sm:$0xf]
  %v84 = vld [vmem:[%s1 + $0xc] sm:$0xf]
  %v85 = vld [vmem:[%s1 + $0x10] sm:$0xf]
  %v86 = vld [vmem:[%s1 + $0x14] sm:$0xf]
  %v87 = vld [vmem:[%s1 + $0x18] sm:$0xf]
  %v88 = vld [vmem:[%s1 + $0x1c] sm:$0xf]
  %v89 = vld [vmem:[%s1 + $0x20] sm:$0xf]
  %v90 = vld [vmem:[%s1 + $0x24] sm:$0xf]
  %v91 = vld [vmem:[%s1 + $0x28] sm:$0xf]
  %v92 = vld [vmem:[%s1 + $0x2c] sm:$0xf]
  %v93 = vld [vmem:[%s1 + $0x30] sm:$0xf]
  %v94 = vld [vmem:[%s1 + $0x34] sm:$0xf]
  %v95 = vld [vmem:[%s1 + $0x38] sm:$0xf]
  %v96 = vld [vmem:[%s1 + $0x3c] sm:$0xf]
  %v113 = vunpack.c.l.b16 %v65
  %v114 = vunpack.c.l.b16 %v66
  %v115 = vunpack.c.l.b16 %v67
  %v116 = vunpack.c.l.b16 %v68
  %v117 = vunpack.c.l.b16 %v69
  %v118 = vunpack.c.l.b16 %v70
  %v119 = vunpack.c.l.b16 %v71
  %v120 = vunpack.c.l.b16 %v72
  %v121 = vunpack.c.l.b16 %v73
  %v122 = vunpack.c.l.b16 %v74
  %v123 = vunpack.c.l.b16 %v75
  %v124 = vunpack.c.l.b16 %v76
  %v125 = vunpack.c.l.b16 %v77
  %v126 = vunpack.c.l.b16 %v78
  %v127 = vunpack.c.l.b16 %v79
  %v128 = vunpack.c.l.b16 %v80
  %v129 = vpack.c.b16 %v114, %v113
  %v130 = vpack.c.b16 %v116, %v115
  %v131 = vpack.c.b16 %v118, %v117
  %v132 = vpack.c.b16 %v120, %v119
  %v133 = vpack.c.b16 %v122, %v121
  %v134 = vpack.c.b16 %v124, %v123
  %v135 = vpack.c.b16 %v126, %v125
  %v136 = vpack.c.b16 %v128, %v127
  %v161 = vunpack.c.l.b16 %v81
  %v162 = vunpack.c.l.b16 %v82
  %v163 = vunpack.c.l.b16 %v83
  %v164 = vunpack.c.l.b16 %v84
  %v165 = vunpack.c.l.b16 %v85
  %v166 = vunpack.c.l.b16 %v86
  %v167 = vunpack.c.l.b16 %v87
  %v168 = vunpack.c.l.b16 %v88
  %v169 = vunpack.c.l.b16 %v89
  %v170 = vunpack.c.l.b16 %v90
  %v171 = vunpack.c.l.b16 %v91
  %v172 = vunpack.c.l.b16 %v92
  %v173 = vunpack.c.l.b16 %v93
  %v174 = vunpack.c.l.b16 %v94
  %v175 = vunpack.c.l.b16 %v95
  %v176 = vunpack.c.l.b16 %v96
  %v177 = vpack.c.b16 %v162, %v161
  %v178 = vpack.c.b16 %v164, %v163
  %v179 = vpack.c.b16 %v166, %v165
  %v180 = vpack.c.b16 %v168, %v167
  %v181 = vpack.c.b16 %v170, %v169
  %v182 = vpack.c.b16 %v172, %v171
  %v183 = vpack.c.b16 %v174, %v173
  %v184 = vpack.c.b16 %v176, %v175
  %193 = vmatpush.bf16.msra.mxu0 %v184
  %194 = vmatpush.bf16.msra.mxu0 %v183
  %195 = vmatpush.bf16.msra.mxu0 %v182
  %196 = vmatpush.bf16.msra.mxu0 %v181
  %197 = vmatpush.bf16.msra.mxu0 %v180
  %198 = vmatpush.bf16.msra.mxu0 %v179
  %199 = vmatpush.bf16.msra.mxu0 %v178
  %200 = vmatpush.bf16.msra.mxu0 %v177
  %201 = vmatmul.bf16.gmra.mxu0 %v129
  %v202 = vpop.f32.mrf.mxu0
  %v203 = vadd.f32 0.0, %v202
  %v204 = vpop.f32.mrf.mxu0
  %v205 = vadd.f32 0.0, %v204
  %206 = vmatmul.bf16.gmra.mxu0 %v130
  %v207 = vpop.f32.mrf.mxu0
  %v208 = vadd.f32 0.0, %v207
  %v209 = vpop.f32.mrf.mxu0
  %v210 = vadd.f32 0.0, %v209
  %211 = vmatmul.bf16.gmra.mxu0 %v131
  %v212 = vpop.f32.mrf.mxu0
  %v213 = vadd.f32 0.0, %v212
  %v214 = vpop.f32.mrf.mxu0
  %v215 = vadd.f32 0.0, %v214
  %216 = vmatmul.bf16.gmra.mxu0 %v132
  %v217 = vpop.f32.mrf.mxu0
  %v218 = vadd.f32 0.0, %v217
  %v219 = vpop.f32.mrf.mxu0
  %v220 = vadd.f32 0.0, %v219
  %221 = vmatmul.bf16.gmra.mxu0 %v133
  %v222 = vpop.f32.mrf.mxu0
  %v223 = vadd.f32 0.0, %v222
  %v224 = vpop.f32.mrf.mxu0
  %v225 = vadd.f32 0.0, %v224
  %226 = vmatmul.bf16.gmra.mxu0 %v134
  %v227 = vpop.f32.mrf.mxu0
  %v228 = vadd.f32 0.0, %v227
  %v229 = vpop.f32.mrf.mxu0
  %v230 = vadd.f32 0.0, %v229
  %231 = vmatmul.bf16.gmra.mxu0 %v135
  %v232 = vpop.f32.mrf.mxu0
  %v233 = vadd.f32 0.0, %v232
  %v234 = vpop.f32.mrf.mxu0
  %v235 = vadd.f32 0.0, %v234
  %236 = vmatmul.bf16.gmra.mxu0 %v136
  %v237 = vpop.f32.mrf.mxu0
  %v238 = vadd.f32 0.0, %v237
  %v239 = vpop.f32.mrf.mxu0
  %v240 = vadd.f32 0.0, %v239
  %241 = vdwg.mxu0
  %v242 = vadd.f32 %v49, %v203
  %v243 = vadd.f32 %v50, %v205
  %v244 = vadd.f32 %v51, %v208
  %v245 = vadd.f32 %v52, %v210
  %v246 = vadd.f32 %v53, %v213
  %v247 = vadd.f32 %v54, %v215
  %v248 = vadd.f32 %v55, %v218
  %v249 = vadd.f32 %v56, %v220
  %v250 = vadd.f32 %v57, %v223
  %v251 = vadd.f32 %v58, %v225
  %v252 = vadd.f32 %v59, %v228
  %v253 = vadd.f32 %v60, %v230
  %v254 = vadd.f32 %v61, %v233
  %v255 = vadd.f32 %v62, %v235
  %v256 = vadd.f32 %v63, %v238
  %v257 = vadd.f32 %v64, %v240
  %258 = vst [vmem:[#allocation2] sm:$0xff] %v242
  %259 = vst [vmem:[#allocation2 + $0x8] sm:$0xff] %v243
  %260 = vst [vmem:[#allocation2 + $0x10] sm:$0xff] %v244
  %261 = vst [vmem:[#allocation2 + $0x18] sm:$0xff] %v245
  %262 = vst [vmem:[#allocation2 + $0x20] sm:$0xff] %v246
  %263 = vst [vmem:[#allocation2 + $0x28] sm:$0xff] %v247
  %264 = vst [vmem:[#allocation2 + $0x30] sm:$0xff] %v248
  %265 = vst [vmem:[#allocation2 + $0x38] sm:$0xff] %v249
  %266 = vst [vmem:[#allocation2 + $0x40] sm:$0xff] %v250
  %267 = vst [vmem:[#allocation2 + $0x48] sm:$0xff] %v251
  %268 = vst [vmem:[#allocation2 + $0x50] sm:$0xff] %v252
  %269 = vst [vmem:[#allocation2 + $0x58] sm:$0xff] %v253
  %270 = vst [vmem:[#allocation2 + $0x60] sm:$0xff] %v254
  %271 = vst [vmem:[#allocation2 + $0x68] sm:$0xff] %v255
  %272 = vst [vmem:[#allocation2 + $0x70] sm:$0xff] %v256
  %273 = vst [vmem:[#allocation2 + $0x78] sm:$0xff] %v257
  // Predicated region
  $region38: #{basic_block_forward.3} parent=0 // pred_check
    %p274 = pneg %p29
  $region39: #{basic_block_forward.3} parent=0 // pred_check_branch
    %276 = sbr.rel (%p274) target = $region41
  $region40: #{basic_block_forward.3} parent=0 // pred_region
    %v277 = vld [vmem:[#allocation2] sm:$0xff]
    %v278 = vld [vmem:[#allocation2 + $0x8] sm:$0xff]
    %v279 = vld [vmem:[#allocation2 + $0x10] sm:$0xff]
    %v280 = vld [vmem:[#allocation2 + $0x18] sm:$0xff]
    %v281 = vld [vmem:[#allocation2 + $0x20] sm:$0xff]
    %v282 = vld [vmem:[#allocation2 + $0x28] sm:$0xff]
    %v283 = vld [vmem:[#allocation2 + $0x30] sm:$0xff]
    %v284 = vld [vmem:[#allocation2 + $0x38] sm:$0xff]
    %v285 = vld [vmem:[#allocation2 + $0x40] sm:$0xff]
    %v286 = vld [vmem:[#allocation2 + $0x48] sm:$0xff]
    %v287 = vld [vmem:[#allocation2 + $0x50] sm:$0xff]
    %v288 = vld [vmem:[#allocation2 + $0x58] sm:$0xff]
    %v289 = vld [vmem:[#allocation2 + $0x60] sm:$0xff]
    %v290 = vld [vmem:[#allocation2 + $0x68] sm:$0xff]
    %v291 = vld [vmem:[#allocation2 + $0x70] sm:$0xff]
    %v292 = vld [vmem:[#allocation2 + $0x78] sm:$0xff]
    %v293 = vld [vmem:[%s2] sm:$0x1]
    %v295 = vperm.slane %v293, 0
    %v297 = vmul.f32 %v277, %v295
    %v298 = vmul.f32 %v278, %v295
    %v299 = vmul.f32 %v279, %v295
    %v300 = vmul.f32 %v280, %v295
    %v301 = vmul.f32 %v281, %v295
    %v302 = vmul.f32 %v282, %v295
    %v303 = vmul.f32 %v283, %v295
    %v304 = vmul.f32 %v284, %v295
    %v305 = vmul.f32 %v285, %v295
    %v306 = vmul.f32 %v286, %v295
    %v307 = vmul.f32 %v287, %v295
    %v308 = vmul.f32 %v288, %v295
    %v309 = vmul.f32 %v289, %v295
    %v310 = vmul.f32 %v290, %v295
    %v311 = vmul.f32 %v291, %v295
    %v312 = vmul.f32 %v292, %v295
    %v313 = vld [vmem:[%s3] sm:$0x1]
    %v315 = vperm.slane %v313, 0
    %v317 = vadd.f32 %v297, %v315
    %v318 = vadd.f32 %v298, %v315
    %v319 = vadd.f32 %v299, %v315
    %v320 = vadd.f32 %v300, %v315
    %v321 = vadd.f32 %v301, %v315
    %v322 = vadd.f32 %v302, %v315
    %v323 = vadd.f32 %v303, %v315
    %v324 = vadd.f32 %v304, %v315
    %v325 = vadd.f32 %v305, %v315
    %v326 = vadd.f32 %v306, %v315
    %v327 = vadd.f32 %v307, %v315
    %v328 = vadd.f32 %v308, %v315
    %v329 = vadd.f32 %v309, %v315
    %v330 = vadd.f32 %v310, %v315
    %v331 = vadd.f32 %v311, %v315
    %v332 = vadd.f32 %v312, %v315
    %v333 = vld [vmem:[%s4] sm:$0xf]
    %v334 = vld [vmem:[%s4 + $0x4] sm:$0xf]
    %v335 = vld [vmem:[%s4 + $0x8] sm:$0xf]
    %v336 = vld [vmem:[%s4 + $0xc] sm:$0xf]
    %v337 = vld [vmem:[%s4 + $0x10] sm:$0xf]
    %v338 = vld [vmem:[%s4 + $0x14] sm:$0xf]
    %v339 = vld [vmem:[%s4 + $0x18] sm:$0xf]
    %v340 = vld [vmem:[%s4 + $0x1c] sm:$0xf]
    %v341 = vld [vmem:[%s4 + $0x20] sm:$0xf]
    %v342 = vld [vmem:[%s4 + $0x24] sm:$0xf]
    %v343 = vld [vmem:[%s4 + $0x28] sm:$0xf]
    %v344 = vld [vmem:[%s4 + $0x2c] sm:$0xf]
    %v345 = vld [vmem:[%s4 + $0x30] sm:$0xf]
    %v346 = vld [vmem:[%s4 + $0x34] sm:$0xf]
    %v347 = vld [vmem:[%s4 + $0x38] sm:$0xf]
    %v348 = vld [vmem:[%s4 + $0x3c] sm:$0xf]
    %v349 = vld [vmem:[%s5] sm:$0xf]
    %v350 = vld [vmem:[%s5 + $0x4] sm:$0xf]
    %v351 = vld [vmem:[%s5 + $0x8] sm:$0xf]
    %v352 = vld [vmem:[%s5 + $0xc] sm:$0xf]
    %v353 = vld [vmem:[%s5 + $0x10] sm:$0xf]
    %v354 = vld [vmem:[%s5 + $0x14] sm:$0xf]
    %v355 = vld [vmem:[%s5 + $0x18] sm:$0xf]
    %v356 = vld [vmem:[%s5 + $0x1c] sm:$0xf]
    %v357 = vld [vmem:[%s5 + $0x20] sm:$0xf]
    %v358 = vld [vmem:[%s5 + $0x24] sm:$0xf]
    %v359 = vld [vmem:[%s5 + $0x28] sm:$0xf]
    %v360 = vld [vmem:[%s5 + $0x2c] sm:$0xf]
    %v361 = vld [vmem:[%s5 + $0x30] sm:$0xf]
    %v362 = vld [vmem:[%s5 + $0x34] sm:$0xf]
    %v363 = vld [vmem:[%s5 + $0x38] sm:$0xf]
    %v364 = vld [vmem:[%s5 + $0x3c] sm:$0xf]
    %v381 = vunpack.c.l.b16 %v333
    %v382 = vunpack.c.l.b16 %v334
    %v383 = vunpack.c.l.b16 %v335
    %v384 = vunpack.c.l.b16 %v336
    %v385 = vunpack.c.l.b16 %v337
    %v386 = vunpack.c.l.b16 %v338
    %v387 = vunpack.c.l.b16 %v339
    %v388 = vunpack.c.l.b16 %v340
    %v389 = vunpack.c.l.b16 %v341
    %v390 = vunpack.c.l.b16 %v342
    %v391 = vunpack.c.l.b16 %v343
    %v392 = vunpack.c.l.b16 %v344
    %v393 = vunpack.c.l.b16 %v345
    %v394 = vunpack.c.l.b16 %v346
    %v395 = vunpack.c.l.b16 %v347
    %v396 = vunpack.c.l.b16 %v348
    %v397 = vpack.c.b16 %v382, %v381
    %v398 = vpack.c.b16 %v384, %v383
    %v399 = vpack.c.b16 %v386, %v385
    %v400 = vpack.c.b16 %v388, %v387
    %v401 = vpack.c.b16 %v390, %v389
    %v402 = vpack.c.b16 %v392, %v391
    %v403 = vpack.c.b16 %v394, %v393
    %v404 = vpack.c.b16 %v396, %v395
    %v429 = vunpack.c.l.b16 %v349
    %v430 = vunpack.c.l.b16 %v350
    %v431 = vunpack.c.l.b16 %v351
    %v432 = vunpack.c.l.b16 %v352
    %v433 = vunpack.c.l.b16 %v353
    %v434 = vunpack.c.l.b16 %v354
    %v435 = vunpack.c.l.b16 %v355
    %v436 = vunpack.c.l.b16 %v356
    %v437 = vunpack.c.l.b16 %v357
    %v438 = vunpack.c.l.b16 %v358
    %v439 = vunpack.c.l.b16 %v359
    %v440 = vunpack.c.l.b16 %v360
    %v441 = vunpack.c.l.b16 %v361
    %v442 = vunpack.c.l.b16 %v362
    %v443 = vunpack.c.l.b16 %v363
    %v444 = vunpack.c.l.b16 %v364
    %v445 = vpack.c.b16 %v430, %v429
    %v446 = vpack.c.b16 %v432, %v431
    %v447 = vpack.c.b16 %v434, %v433
    %v448 = vpack.c.b16 %v436, %v435
    %v449 = vpack.c.b16 %v438, %v437
    %v450 = vpack.c.b16 %v440, %v439
    %v451 = vpack.c.b16 %v442, %v441
    %v452 = vpack.c.b16 %v444, %v443
    %461 = vmatpush.bf16.msra.mxu0 %v452
    %462 = vmatpush.bf16.msra.mxu0 %v451
    %463 = vmatpush.bf16.msra.mxu0 %v450
    %464 = vmatpush.bf16.msra.mxu0 %v449
    %465 = vmatpush.bf16.msra.mxu0 %v448
    %466 = vmatpush.bf16.msra.mxu0 %v447
    %467 = vmatpush.bf16.msra.mxu0 %v446
    %468 = vmatpush.bf16.msra.mxu0 %v445
    %469 = vmatmul.bf16.gmra.mxu0 %v397
    %v470 = vpop.f32.mrf.mxu0
    %v471 = vadd.f32 0.0, %v470
    %v472 = vpop.f32.mrf.mxu0
    %v473 = vadd.f32 0.0, %v472
    %474 = vmatmul.bf16.gmra.mxu0 %v398
    %v475 = vpop.f32.mrf.mxu0
    %v476 = vadd.f32 0.0, %v475
    %v477 = vpop.f32.mrf.mxu0
    %v478 = vadd.f32 0.0, %v477
    %479 = vmatmul.bf16.gmra.mxu0 %v399
    %v480 = vpop.f32.mrf.mxu0
    %v481 = vadd.f32 0.0, %v480
    %v482 = vpop.f32.mrf.mxu0
    %v483 = vadd.f32 0.0, %v482
    %484 = vmatmul.bf16.gmra.mxu0 %v400
    %v485 = vpop.f32.mrf.mxu0
    %v486 = vadd.f32 0.0, %v485
    %v487 = vpop.f32.mrf.mxu0
    %v488 = vadd.f32 0.0, %v487
    %489 = vmatmul.bf16.gmra.mxu0 %v401
    %v490 = vpop.f32.mrf.mxu0
    %v491 = vadd.f32 0.0, %v490
    %v492 = vpop.f32.mrf.mxu0
    %v493 = vadd.f32 0.0, %v492
    %494 = vmatmul.bf16.gmra.mxu0 %v402
    %v495 = vpop.f32.mrf.mxu0
    %v496 = vadd.f32 0.0, %v495
    %v497 = vpop.f32.mrf.mxu0
    %v498 = vadd.f32 0.0, %v497
    %499 = vmatmul.bf16.gmra.mxu0 %v403
    %v500 = vpop.f32.mrf.mxu0
    %v501 = vadd.f32 0.0, %v500
    %v502 = vpop.f32.mrf.mxu0
    %v503 = vadd.f32 0.0, %v502
    %504 = vmatmul.bf16.gmra.mxu0 %v404
    %v505 = vpop.f32.mrf.mxu0
    %v506 = vadd.f32 0.0, %v505
    %v507 = vpop.f32.mrf.mxu0
    %v508 = vadd.f32 0.0, %v507
    %509 = vdwg.mxu0
    %v510 = vld [vmem:[%s6] sm:$0x1]
    %v512 = vperm.slane %v510, 0
    %v514 = vmul.f32 %v471, %v512
    %v515 = vmul.f32 %v473, %v512
    %v516 = vmul.f32 %v476, %v512
    %v517 = vmul.f32 %v478, %v512
    %v518 = vmul.f32 %v481, %v512
    %v519 = vmul.f32 %v483, %v512
    %v520 = vmul.f32 %v486, %v512
    %v521 = vmul.f32 %v488, %v512
    %v522 = vmul.f32 %v491, %v512
    %v523 = vmul.f32 %v493, %v512
    %v524 = vmul.f32 %v496, %v512
    %v525 = vmul.f32 %v498, %v512
    %v526 = vmul.f32 %v501, %v512
    %v527 = vmul.f32 %v503, %v512
    %v528 = vmul.f32 %v506, %v512
    %v529 = vmul.f32 %v508, %v512
    %v530 = vadd.f32 %v317, %v514
    %v531 = vadd.f32 %v318, %v515
    %v532 = vadd.f32 %v319, %v516
    %v533 = vadd.f32 %v320, %v517
    %v534 = vadd.f32 %v321, %v518
    %v535 = vadd.f32 %v322, %v519
    %v536 = vadd.f32 %v323, %v520
    %v537 = vadd.f32 %v324, %v521
    %v538 = vadd.f32 %v325, %v522
    %v539 = vadd.f32 %v326, %v523
    %v540 = vadd.f32 %v327, %v524
    %v541 = vadd.f32 %v328, %v525
    %v542 = vadd.f32 %v329, %v526
    %v543 = vadd.f32 %v330, %v527
    %v544 = vadd.f32 %v331, %v528
    %v545 = vadd.f32 %v332, %v529
    %v546 = vld [vmem:[%s7] sm:$0x1]
    %v548 = vperm.slane %v546, 0
    %v550 = vadd.f32 %v530, %v548
    %v551 = vadd.f32 %v531, %v548
    %v552 = vadd.f32 %v532, %v548
    %v553 = vadd.f32 %v533, %v548
    %v554 = vadd.f32 %v534, %v548
    %v555 = vadd.f32 %v535, %v548
    %v556 = vadd.f32 %v536, %v548
    %v557 = vadd.f32 %v537, %v548
    %v558 = vadd.f32 %v538, %v548
    %v559 = vadd.f32 %v539, %v548
    %v560 = vadd.f32 %v540, %v548
    %v561 = vadd.f32 %v541, %v548
    %v562 = vadd.f32 %v542, %v548
    %v563 = vadd.f32 %v543, %v548
    %v564 = vadd.f32 %v544, %v548
    %v565 = vadd.f32 %v545, %v548
    %v566 = vmax.f32 %v550, 0.0
    %v567 = vmax.f32 %v551, 0.0
    %v568 = vmax.f32 %v552, 0.0
    %v569 = vmax.f32 %v553, 0.0
    %v570 = vmax.f32 %v554, 0.0
    %v571 = vmax.f32 %v555, 0.0
    %v572 = vmax.f32 %v556, 0.0
    %v573 = vmax.f32 %v557, 0.0
    %v574 = vmax.f32 %v558, 0.0
    %v575 = vmax.f32 %v559, 0.0
    %v576 = vmax.f32 %v560, 0.0
    %v577 = vmax.f32 %v561, 0.0
    %v578 = vmax.f32 %v562, 0.0
    %v579 = vmax.f32 %v563, 0.0
    %v580 = vmax.f32 %v564, 0.0
    %v581 = vmax.f32 %v565, 0.0
    %582 = vst [vmem:[%s8] sm:$0xff] %v566
    %583 = vst [vmem:[%s8 + $0x8] sm:$0xff] %v567
    %584 = vst [vmem:[%s8 + $0x10] sm:$0xff] %v568
    %585 = vst [vmem:[%s8 + $0x18] sm:$0xff] %v569
    %586 = vst [vmem:[%s8 + $0x20] sm:$0xff] %v570
    %587 = vst [vmem:[%s8 + $0x28] sm:$0xff] %v571
    %588 = vst [vmem:[%s8 + $0x30] sm:$0xff] %v572
    %589 = vst [vmem:[%s8 + $0x38] sm:$0xff] %v573
    %590 = vst [vmem:[%s8 + $0x40] sm:$0xff] %v574
    %591 = vst [vmem:[%s8 + $0x48] sm:$0xff] %v575
    %592 = vst [vmem:[%s8 + $0x50] sm:$0xff] %v576
    %593 = vst [vmem:[%s8 + $0x58] sm:$0xff] %v577
    %594 = vst [vmem:[%s8 + $0x60] sm:$0xff] %v578
    %595 = vst [vmem:[%s8 + $0x68] sm:$0xff] %v579
    %596 = vst [vmem:[%s8 + $0x70] sm:$0xff] %v580
    %597 = vst [vmem:[%s8 + $0x78] sm:$0xff] %v581
  $region41: #{basic_block_forward.3} parent=0 // pred_fallthru
    _
  // Predicated region
  $region42: #{basic_block_forward.3} parent=0 // pred_check
    _
  $region43: #{basic_block_forward.3} parent=0 // pred_check_branch
    %599 = sbr.rel (0) target = $region45
  $region44: #{basic_block_forward.3} parent=0 // pred_region
    _
  $region45: #{basic_block_forward.3} parent=0 // pred_fallthru
    _
  // Predicated region
  $region46: #{basic_block_forward.3} parent=0 // pred_check
    _
  $region47: #{basic_block_forward.3} parent=0 // pred_check_branch
    %601 = sbr.rel (0) target = $region49
  $region48: #{basic_block_forward.3} parent=0 // pred_region
    _
  $region49: #{basic_block_forward.3} parent=0 // pred_fallthru
    _

</llo_original>
